<compile_context>
chip_gen: v5e
topology: v5e:2x2
jax: 0.10.0
libtpu: 0.0.40
codegen_flags: <defaults>
</compile_context>

<pallas_src>
import functools

import jax
import jax.numpy as jnp
from jax.experimental import pallas as pl
from jax.experimental.pallas import tpu as pltpu

LANES = 128
SUBLANES = 8


def _abs_pow(d, gamma):
    """|d| ** gamma using VPU multiplies for small integer gamma (no EUP pow)."""
    g = float(gamma)
    if g == 2.0:
        return d * d                      # |d|^2 == d^2 -> abs not needed
    if g == 1.0:
        return jnp.abs(d)
    if g.is_integer() and 1.0 <= g <= 16.0:
        gi = int(g)
        dd = d * d
        r = jnp.abs(d) if gi % 2 else None
        for _ in range(gi // 2):
            r = dd if r is None else r * dd
        return r
    # TODO(synk): non-integer gamma falls back to pow (exp+log on the EUP).
    return jnp.abs(d) ** jnp.float32(g)


def _focal_loss_kernel(x_ref, y_ref, w_ref, acc_ref, *, alpha, gamma,
                       block_rows, valid_rows, need_row_mask):
    k = pl.program_id(1)                       # reduction axis ("arbitrary")

    @pl.when(k == 0)
    def _init():
        acc_ref[...] = jnp.zeros_like(acc_ref)

    x = x_ref[...].astype(jnp.float32)
    y = y_ref[...].astype(jnp.float32)
    w = w_ref[...].astype(jnp.float32)

    # Numerically-stable log-sigmoid; matches PyTorch's softplus-threshold-50
    # formulation exactly in f32:
    #   log_probs   = log(sigmoid(x))     = min(x, 0) - log1p(exp(-|x|))
    #   log_1_probs = log(1 - sigmoid(x)) = log_probs - x
    #   probs       = sigmoid(x)          = exp(log_probs)
    log_probs = jnp.minimum(x, 0.0) - jnp.log1p(jnp.exp(-jnp.abs(x)))
    log_1_probs = log_probs - x
    probs = jnp.exp(log_probs)

    pow_term = _abs_pow(y - probs, gamma)      # |y - p| ** gamma, no pow
    # coeff = -|y-p|^gamma : the minus is folded into trace-time constants.
    na = -float(alpha)
    nb = -(1.0 - float(alpha))
    term = (na * y) * log_probs + (nb * (1.0 - y)) * log_1_probs
    loss = term * (pow_term * w)

    def _accumulate(v):
        # Sublane-aligned partial sums: pure VPU adds into the (8,128) output
        # block, which stays resident across the whole reduction axis.
        acc_ref[...] += v.reshape(block_rows // SUBLANES, SUBLANES, LANES).sum(axis=0)

    if need_row_mask:
        row0 = (pl.program_id(0) * pl.num_programs(1) + k) * block_rows
        overruns = row0 + block_rows > valid_rows

        @pl.when(jnp.logical_not(overruns))
        def _full():
            _accumulate(loss)

        @pl.when(overruns)
        def _partial():
            rid = row0 + jax.lax.broadcasted_iota(jnp.int32, loss.shape, 0)
            # True select: garbage rows (OOB reads / duplicated clamped blocks)
            # never leak into the sum.  Do NOT turn this into multiply-by-mask.
            _accumulate(jnp.where(rid < valid_rows, loss, 0.0))
    else:
        _accumulate(loss)


def _focal_loss_elems_jnp(x, y, w, alpha, gamma):
    """Tiny jnp fallback for the <128-element tail (avoids padding all streams)."""
    x = x.astype(jnp.float32)
    y = y.astype(jnp.float32)
    w = w.astype(jnp.float32)
    log_probs = jnp.minimum(x, 0.0) - jnp.log1p(jnp.exp(-jnp.abs(x)))
    log_1_probs = log_probs - x
    probs = jnp.exp(log_probs)
    coeff = -(jnp.abs(y - probs) ** jnp.float32(gamma))
    loss = alpha * y * log_probs + (1.0 - alpha) * (1.0 - y) * log_1_probs
    return loss * coeff * w


def _device_kind():
    try:
        return jax.devices()[0].device_kind.lower()
    except Exception:
        return ""


def focal_loss_pallas(logits, label, weight, *, alpha=0.75, gamma=2,
                      reduction="mean"):
    """Pallas TPU implementation of FocalLoss.forward."""
    assert logits.shape == label.shape == weight.shape
    orig_count = int(logits.size)

    def as_float(a):
        # bf16/f32 pass through untouched (no extra HBM pass); bool/int labels
        # are widened once in the wrapper.
        return a if jnp.issubdtype(a.dtype, jnp.floating) else a.astype(jnp.float32)

    fx = as_float(jnp.asarray(logits)).reshape(-1)
    fy = as_float(jnp.asarray(label)).reshape(-1)
    fw = as_float(jnp.asarray(weight)).reshape(-1)

    kind = _device_kind()
    if "v6" in kind:                       # 128 MiB physical VMEM, fast HBM
        max_rows, vmem_limit = 8192, 64 * 1024 * 1024
    elif "v2" in kind or "v3" in kind:     # small physical VMEM
        max_rows, vmem_limit = 1024, None
    else:                                  # v5e / v7x-safe default (12 MiB dbuf)
        max_rows, vmem_limit = 4096, 32 * 1024 * 1024
    cores = 2 if "v7" in kind else 1       # v7x: 2 TensorCores per chip

    # No jnp.pad: only the 128-aligned prefix goes through the kernel (free
    # metadata reshape); the remainder is computed below.
    main = (orig_count // LANES) * LANES
    total = jnp.float32(0.0)

    if main:
        rows = main // LANES
        x2 = fx[:main].reshape(rows, LANES)
        y2 = fy[:main].reshape(rows, LANES)
        w2 = fw[:main].reshape(rows, LANES)

        min_item = min(x2.dtype.itemsize, y2.dtype.itemsize, w2.dtype.itemsize)
        row_mult = SUBLANES * max(1, 4 // int(min_item))   # 8 f32, 16 bf16, 32 i8
        block_rows = min(max_rows, pl.cdiv(rows, row_mult) * row_mult)
        num_blocks = pl.cdiv(rows, block_rows)

        use_core_parallel = cores > 1 and num_blocks >= cores
        num_par = cores if use_core_parallel else 1
        nk = pl.cdiv(num_blocks, num_par)
        need_row_mask = (num_par * nk * block_rows) != rows

        def in_map(p, k):
            g = p * nk + k
            if num_par * nk != num_blocks:
                # Rounded-up split: clamp the block index; the in-kernel row
                # mask zeroes the duplicated blocks' contribution.
                g = jnp.minimum(g, num_blocks - 1)
            return (g, 0)

        kernel = functools.partial(
            _focal_loss_kernel, alpha=float(alpha), gamma=float(gamma),
            block_rows=block_rows, valid_rows=rows, need_row_mask=need_row_mask)

        in_spec = pl.BlockSpec((block_rows, LANES), in_map)
        bytes_accessed = (x2.size * x2.dtype.itemsize
                          + y2.size * y2.dtype.itemsize
                          + w2.size * w2.dtype.itemsize
                          + num_par * SUBLANES * LANES * 4)
        cost = pl.CostEstimate(flops=13 * main, transcendentals=3 * main,
                               bytes_accessed=int(bytes_accessed))
        dims = ((pltpu.CORE_PARALLEL, pltpu.ARBITRARY) if use_core_parallel
                else ("parallel", "arbitrary"))

        partial_sums = pl.pallas_call(
            kernel,
            out_shape=jax.ShapeDtypeStruct((num_par * SUBLANES, LANES), jnp.float32),
            grid_spec=pltpu.PrefetchScalarGridSpec(
                num_scalar_prefetch=0,
                grid=(num_par, nk),
                in_specs=[in_spec, in_spec, in_spec],
                out_specs=pl.BlockSpec((SUBLANES, LANES), lambda p, k: (p, 0)),
            ),
            compiler_params=pltpu.CompilerParams(
                dimension_semantics=dims, vmem_limit_bytes=vmem_limit),
            cost_estimate=cost,
        )(x2, y2, w2)
        total = total + jnp.sum(partial_sums)

    rem = orig_count - main
    if rem:
        total = total + jnp.sum(
            _focal_loss_elems_jnp(fx[main:], fy[main:], fw[main:],
                                  float(alpha), float(gamma)))

    if reduction == "mean":
        return total / jnp.float32(orig_count)
    if reduction == "sum":
        return total
    if reduction == "batchmean":
        # loss.mean(0).sum() == total_sum / batch
        return total / jnp.float32(logits.shape[0])
    # TODO(synk): reduction='none' (elementwise output) needs a map-style kernel.
    raise NotImplementedError(reduction)


def _focal_loss_ref(logits, label, weight, alpha=0.75, gamma=2):
    x = logits.astype(jnp.float32)
    y = label.astype(jnp.float32)
    w = weight.astype(jnp.float32)
    probs = jax.nn.sigmoid(x)
    coeff = -(jnp.abs(y - probs) ** gamma)
    log_probs = jax.nn.log_sigmoid(x)
    log_1_probs = jax.nn.log_sigmoid(-x)
    loss = y * alpha * log_probs + (1.0 - y) * (1.0 - alpha) * log_1_probs
    loss = loss * coeff * w
    return jnp.mean(loss)


if __name__ == "__main__":
    key = jax.random.PRNGKey(0)
    k1, k2, k3 = jax.random.split(key, 3)

    B, C, H, W = 2, 4, 16, 16  # NCHW, matching the PyTorch usage
    logits = jax.random.normal(k1, (B, C, H, W), dtype=jnp.float32)
    label = jax.random.bernoulli(k2, 0.5, (B, C, H, W)).astype(jnp.float32)
    weight = jax.random.uniform(k3, (B, C, H, W), dtype=jnp.float32)

    loss = focal_loss_pallas(logits, label, weight, alpha=0.75, gamma=2,
                             reduction="mean")
    loss = jax.block_until_ready(loss)

    ref = _focal_loss_ref(logits, label, weight, alpha=0.75, gamma=2)
    assert jnp.allclose(loss, ref, rtol=1e-5, atol=1e-6), (loss, ref)

    print("KERNEL_OK")
</pallas_src>

<mosaic_0001>
module attributes {stable_mosaic.version = 11 : i64} {
  func.func @_focal_loss_kernel(%arg0: i32, %arg1: i32, %arg2: memref<16x128xf32, #tpu.memory_space<vmem>>, %arg3: memref<16x128xf32, #tpu.memory_space<vmem>>, %arg4: memref<16x128xf32, #tpu.memory_space<vmem>>, %arg5: memref<8x128xf32, #tpu.memory_space<vmem>>) attributes {dimension_semantics = [#tpu.dimension_semantics<parallel>, #tpu.dimension_semantics<arbitrary>], iteration_bounds = array<i64: 1, 1>, scalar_prefetch = 0 : i64, scratch_operands = 0 : i64, tpu.core_type = #tpu.core_type<tc>, window_params = [{transform_indices = @transform_0, window_bounds = array<i64: 16, 128>}, {transform_indices = @transform_1, window_bounds = array<i64: 16, 128>}, {transform_indices = @transform_2, window_bounds = array<i64: 16, 128>}, {transform_indices = @transform_3, window_bounds = array<i64: 8, 128>}]} {
    %c0_i32 = arith.constant 0 : i32
    %0 = arith.cmpi eq, %arg1, %c0_i32 : i32
    %1 = arith.extui %0 : i1 to i32
    %c0_i32_0 = arith.constant 0 : i32
    %2 = arith.cmpi ne, %1, %c0_i32_0 : i32
    scf.if %2 {
      %cst_15 = arith.constant 0.000000e+00 : f32
      %34 = vector.broadcast %cst_15 : f32 to vector<8x128xf32>
      %c0_16 = arith.constant 0 : index
      %c0_17 = arith.constant 0 : index
      %35 = vector.load %arg5[%c0_16, %c0_17] : memref<8x128xf32, #tpu.memory_space<vmem>>, vector<8x128xf32>
      tpu.vector_store %arg5[%c0_16, %c0_17], %34 {strides = array<i32>} : memref<8x128xf32, #tpu.memory_space<vmem>>, vector<8x128xf32>,
    } else {
    }
    %c0 = arith.constant 0 : index
    %c0_1 = arith.constant 0 : index
    %3 = vector.load %arg2[%c0, %c0_1] : memref<16x128xf32, #tpu.memory_space<vmem>>, vector<16x128xf32>
    %c0_2 = arith.constant 0 : index
    %c0_3 = arith.constant 0 : index
    %4 = vector.load %arg3[%c0_2, %c0_3] : memref<16x128xf32, #tpu.memory_space<vmem>>, vector<16x128xf32>
    %c0_4 = arith.constant 0 : index
    %c0_5 = arith.constant 0 : index
    %5 = vector.load %arg4[%c0_4, %c0_5] : memref<16x128xf32, #tpu.memory_space<vmem>>, vector<16x128xf32>
    %cst = arith.constant 0.000000e+00 : f32
    %6 = vector.broadcast %cst : f32 to vector<16x128xf32>
    %7 = arith.minimumf %3, %6 : vector<16x128xf32>
    %8 = math.absf %3 : vector<16x128xf32>
    %cst_6 = arith.constant 0.000000e+00 : f32
    %9 = vector.broadcast %cst_6 : f32 to vector<16x128xf32>
    %10 = arith.subf %9, %8 : vector<16x128xf32>
    %11 = math.exp %10 : vector<16x128xf32>
    %12 = math.log1p %11 : vector<16x128xf32>
    %13 = arith.subf %7, %12 : vector<16x128xf32>
    %14 = arith.subf %13, %3 : vector<16x128xf32>
    %15 = math.exp %13 : vector<16x128xf32>
    %16 = arith.subf %4, %15 : vector<16x128xf32>
    %17 = arith.mulf %16, %16 : vector<16x128xf32>
    %cst_7 = arith.constant -7.500000e-01 : f32
    %18 = vector.broadcast %cst_7 : f32 to vector<16x128xf32>
    %19 = arith.mulf %18, %4 : vector<16x128xf32>
    %20 = arith.mulf %19, %13 : vector<16x128xf32>
    %cst_8 = arith.constant 1.000000e+00 : f32
    %21 = vector.broadcast %cst_8 : f32 to vector<16x128xf32>
    %22 = arith.subf %21, %4 : vector<16x128xf32>
    %cst_9 = arith.constant -2.500000e-01 : f32
    %23 = vector.broadcast %cst_9 : f32 to vector<16x128xf32>
    %24 = arith.mulf %23, %22 : vector<16x128xf32>
    %25 = arith.mulf %24, %14 : vector<16x128xf32>
    %26 = arith.addf %20, %25 : vector<16x128xf32>
    %27 = arith.mulf %17, %5 : vector<16x128xf32>
    %28 = arith.mulf %26, %27 : vector<16x128xf32>
    %c0_10 = arith.constant 0 : index
    %c0_11 = arith.constant 0 : index
    %29 = vector.load %arg5[%c0_10, %c0_11] : memref<8x128xf32, #tpu.memory_space<vmem>>, vector<8x128xf32>
    %30 = vector.shape_cast %28 : vector<16x128xf32> to vector<2x8x128xf32>
    %cst_12 = arith.constant dense<0.000000e+00> : vector<8x128xf32>
    %31 = vector.multi_reduction <add>, %30, %cst_12 [0] : vector<2x8x128xf32> to vector<8x128xf32>
    %32 = arith.addf %29, %31 : vector<8x128xf32>
    %c0_13 = arith.constant 0 : index
    %c0_14 = arith.constant 0 : index
    %33 = vector.load %arg5[%c0_13, %c0_14] : memref<8x128xf32, #tpu.memory_space<vmem>>, vector<8x128xf32>
    tpu.vector_store %arg5[%c0_13, %c0_14], %32 {strides = array<i32>} : memref<8x128xf32, #tpu.memory_space<vmem>>, vector<8x128xf32>,
    return
  }
  func.func @transform_0(%arg0: i32, %arg1: i32) -> (i32, i32) {
    %c1_i32 = arith.constant 1 : i32
    %0 = arith.muli %arg0, %c1_i32 : i32
    %1 = arith.addi %0, %arg1 : i32
    %c0_i32 = arith.constant 0 : i32
    %c0_i32_0 = arith.constant 0 : i32
    return %1, %c0_i32 : i32, i32
  }
  func.func @transform_1(%arg0: i32, %arg1: i32) -> (i32, i32) {
    %c1_i32 = arith.constant 1 : i32
    %0 = arith.muli %arg0, %c1_i32 : i32
    %1 = arith.addi %0, %arg1 : i32
    %c0_i32 = arith.constant 0 : i32
    %c0_i32_0 = arith.constant 0 : i32
    return %1, %c0_i32 : i32, i32
  }
  func.func @transform_2(%arg0: i32, %arg1: i32) -> (i32, i32) {
    %c1_i32 = arith.constant 1 : i32
    %0 = arith.muli %arg0, %c1_i32 : i32
    %1 = arith.addi %0, %arg1 : i32
    %c0_i32 = arith.constant 0 : i32
    %c0_i32_0 = arith.constant 0 : i32
    return %1, %c0_i32 : i32, i32
  }
  func.func @transform_3(%arg0: i32, %arg1: i32) -> (i32, i32) {
    %c0_i32 = arith.constant 0 : i32
    %c0_i32_0 = arith.constant 0 : i32
    return %arg0, %c0_i32 : i32, i32
  }
}

</mosaic_0001>

<llo_original>
// kernel: tpu_custom_call.1
$region0: #{tpu_custom_call.1}
  #allocation0 [shape = 'u32[]', space=smem, size = 0x4, offset = 0x4, fixed_abs, tag = 'smem constant byte address 0x4 - core index']
  #allocation1 [shape = 'u32[72,128]{1,0:T(1,128)}', space=vmem, size = 0x9000, scoped, tag = 'internal scratch']
  %s0 = inlined_call_operand.hbm [shape: f32[16,128], index: 0, kind: input, shape index: {}]
  %s1 = inlined_call_operand.hbm [shape: f32[16,128], index: 1, kind: input, shape index: {}]
  %s2 = inlined_call_operand.hbm [shape: f32[16,128], index: 2, kind: input, shape index: {}]
  %s3 = inlined_call_operand.hbm [shape: f32[8,128], index: 3, kind: output, shape index: {}]
  %s4 = sld [smem:[#allocation0]]
  $region38: #{tpu_custom_call.1} parent=0
    _
  %s6 = ssub.s32 1, %s4
  %s7 = scalar_select 0, %s6, %s4
  $region1: #{tpu_custom_call.1} parent=0
    #allocation2 [shape = 'u8[8192]{0}', space=vmem, size = 0x2000, scoped, tag = 'input window, operand 0, single buffered']
    #allocation3 [shape = 's32[1]{0}', space=sflag, size = 0x4, scoped, tag = 'scoped memory for tpu_custom_call.1']
    #allocation4 [shape = 's32[1]{0}', space=sflag, size = 0x4, scoped, tag = 'scoped memory for tpu_custom_call.1']
    #allocation5 [shape = 'u8[8192]{0}', space=vmem, size = 0x2000, scoped, tag = 'input window, operand 1, single buffered']
    #allocation6 [shape = 's32[1]{0}', space=sflag, size = 0x4, scoped, tag = 'scoped memory for tpu_custom_call.1']
    #allocation7 [shape = 'u8[8192]{0}', space=vmem, size = 0x2000, scoped, tag = 'input window, operand 2, single buffered']
    #allocation8 [shape = 'u8[4096]{0}', space=vmem, size = 0x1000, scoped, tag = 'output window, operand 0, single buffered']
    %8 = vsyncpa [#allocation3], 0
    %9 = vsyncpa [#allocation6], 0
    %10 = vsyncpa [#allocation4], 0
    // Predicated region
    $region2: #{tpu_custom_call.1} parent=1 // pred_check
      _
    $region3: #{tpu_custom_call.1} parent=1 // pred_check_branch
      %12 = sbr.rel (0) target = $region5
    $region4: #{tpu_custom_call.1} parent=1 // pred_region
      %s13 = sadd.s32 0, 0
      %s14 = smul.u32 2, %s13
      %16 = vsyncadd [#allocation3], 0
      %s17 = smul.addr %s14, 8
      %s18 = scalar_lea.hbm %s0, %s17
      %s19 = sshll.u32 %s18, 4
      %s20 = int_to_ptr.hbm [resolvable:$true] %s19
      %s21 = sshll.u32 [#allocation2], 4
      %s22 = int_to_ptr.vmem [resolvable:$true] %s21
      %27 = dma.hbm_to_vmem [thread:$0]  %s20, 256, %s22, [#allocation3], 128, 128, 8
    $region5: #{tpu_custom_call.1} parent=1 // pred_fallthru
      _
    // Predicated region
    $region6: #{tpu_custom_call.1} parent=1 // pred_check
      _
    $region7: #{tpu_custom_call.1} parent=1 // pred_check_branch
      %29 = sbr.rel (0) target = $region9
    $region8: #{tpu_custom_call.1} parent=1 // pred_region
      %s30 = sadd.s32 0, 0
      %s31 = smul.u32 2, %s30
      %33 = vsyncadd [#allocation6], 0
      %s34 = smul.addr %s31, 8
      %s35 = scalar_lea.hbm %s1, %s34
      %s36 = sshll.u32 %s35, 4
      %s37 = int_to_ptr.hbm [resolvable:$true] %s36
      %s38 = sshll.u32 [#allocation5], 4
      %s39 = int_to_ptr.vmem [resolvable:$true] %s38
      %44 = dma.hbm_to_vmem [thread:$0]  %s37, 256, %s39, [#allocation6], 128, 128, 8
    $region9: #{tpu_custom_call.1} parent=1 // pred_fallthru
      _
    // Predicated region
    $region10: #{tpu_custom_call.1} parent=1 // pred_check
      _
    $region11: #{tpu_custom_call.1} parent=1 // pred_check_branch
      %46 = sbr.rel (0) target = $region13
    $region12: #{tpu_custom_call.1} parent=1 // pred_region
      %s47 = sadd.s32 0, 0
      %s48 = smul.u32 2, %s47
      %50 = vsyncadd [#allocation6], 0
      %s51 = smul.addr %s48, 8
      %s52 = scalar_lea.hbm %s2, %s51
      %s53 = sshll.u32 %s52, 4
      %s54 = int_to_ptr.hbm [resolvable:$true] %s53
      %s55 = sshll.u32 [#allocation7], 4
      %s56 = int_to_ptr.vmem [resolvable:$true] %s55
      %61 = dma.hbm_to_vmem [thread:$0]  %s54, 256, %s56, [#allocation6], 128, 128, 8
    $region13: #{tpu_custom_call.1} parent=1 // pred_fallthru
      _
    // Predicated region
    $region14: #{tpu_custom_call.1} parent=1 // pred_check
      _
    $region15: #{tpu_custom_call.1} parent=1 // pred_check_branch
      %63 = sbr.rel (0) target = $region17
    $region16: #{tpu_custom_call.1} parent=1 // pred_region
      %65 = dma.done [#allocation3], 256
    $region17: #{tpu_custom_call.1} parent=1 // pred_fallthru
      _
    // Predicated region
    $region18: #{tpu_custom_call.1} parent=1 // pred_check
      _
    $region19: #{tpu_custom_call.1} parent=1 // pred_check_branch
      %67 = sbr.rel (0) target = $region21
    $region20: #{tpu_custom_call.1} parent=1 // pred_region
      %69 = dma.done [#allocation6], 256
    $region21: #{tpu_custom_call.1} parent=1 // pred_fallthru
      _
    // Predicated region
    $region22: #{tpu_custom_call.1} parent=1 // pred_check
      _
    $region23: #{tpu_custom_call.1} parent=1 // pred_check_branch
      %71 = sbr.rel (0) target = $region25
    $region24: #{tpu_custom_call.1} parent=1 // pred_region
      %73 = dma.done [#allocation6], 256
    $region25: #{tpu_custom_call.1} parent=1 // pred_fallthru
      _
    %s74 = sadd.s32 0, 0
    %s75 = smul.u32 2, %s74
    %s76 = sadd.s32 0, 0
    %s77 = smul.u32 2, %s76
    %s78 = sadd.s32 0, 0
    %s79 = smul.u32 2, %s78
    %p80 = scmp.eq.s32.totalorder 0, 0
    // Predicated region
    $region26: #{tpu_custom_call.1} parent=1 // pred_check
      %p81 = pneg %p80
    $region27: #{tpu_custom_call.1} parent=1 // pred_check_branch
      %83 = sbr.rel (%p81) target = $region29
    $region28: #{tpu_custom_call.1} parent=1 // pred_region
      %84 = vst [vmem:[#allocation8] sm:$0xff] 0.0
    $region29: #{tpu_custom_call.1} parent=1 // pred_fallthru
      _
    %v85 = vld [vmem:[#allocation2] sm:$0xff]
    %v86 = vld [vmem:[#allocation2 + $0x8] sm:$0xff]
    %v87 = vld [vmem:[#allocation5] sm:$0xff]
    %v88 = vld [vmem:[#allocation5 + $0x8] sm:$0xff]
    %v89 = vld [vmem:[#allocation7] sm:$0xff]
    %v90 = vld [vmem:[#allocation7 + $0x8] sm:$0xff]
    %v91 = vmin.f32 %v85, 0.0
    %v92 = vmin.f32 %v86, 0.0
    %v93 = vand.u32 2147483647, %v85
    %v94 = vand.u32 2147483647, %v86
    %v95 = vsub.f32 0.0, %v93
    %v96 = vsub.f32 0.0, %v94
    %v97 = vmul.f32 %v95, 1.442695
    %v98 = vpow.pop %v97
    %v99 = vmul.f32 %v96, 1.442695
    %v100 = vpow.pop %v99
    %v101 = vadd.f32 %v98, 1.0
    %v102 = vlog2.pop %v101
    %v103 = vmul.f32 %v102, 0.6931472
    %v104 = vmul.f32 -0.5, %v98
    %v105 = vadd.f32 %v104, 1.0
    %v106 = vmul.f32 %v105, %v98
    %v107 = vand.u32 2147483647, %v98
    %vm108 = vcmp.lt.f32.partialorder %v107, 0.0004427343
    %v109 = vsel %vm108, %v106, %v103
    %v110 = vadd.f32 %v100, 1.0
    %v111 = vlog2.pop %v110
    %v112 = vmul.f32 %v111, 0.6931472
    %v113 = vmul.f32 -0.5, %v100
    %v114 = vadd.f32 %v113, 1.0
    %v115 = vmul.f32 %v114, %v100
    %v116 = vand.u32 2147483647, %v100
    %vm117 = vcmp.lt.f32.partialorder %v116, 0.0004427343
    %v118 = vsel %vm117, %v115, %v112
    %v119 = vsub.f32 %v91, %v109
    %v120 = vsub.f32 %v92, %v118
    %v121 = vsub.f32 %v119, %v85
    %v122 = vsub.f32 %v120, %v86
    %v123 = vmul.f32 %v119, 1.442695
    %v124 = vpow.pop %v123
    %v125 = vmul.f32 %v120, 1.442695
    %v126 = vpow.pop %v125
    %v127 = vsub.f32 %v87, %v124
    %v128 = vsub.f32 %v88, %v126
    %v129 = vmul.f32 %v127, %v127
    %v130 = vmul.f32 %v128, %v128
    %v131 = vmul.f32 %v87, -0.75
    %v132 = vmul.f32 %v88, -0.75
    %v133 = vmul.f32 %v131, %v119
    %v134 = vmul.f32 %v132, %v120
    %v135 = vsub.f32 1.0, %v87
    %v136 = vsub.f32 1.0, %v88
    %v137 = vmul.f32 %v135, -0.25
    %v138 = vmul.f32 %v136, -0.25
    %v139 = vmul.f32 %v137, %v121
    %v140 = vmul.f32 %v138, %v122
    %v141 = vadd.f32 %v133, %v139
    %v142 = vadd.f32 %v134, %v140
    %v143 = vmul.f32 %v129, %v89
    %v144 = vmul.f32 %v130, %v90
    %v145 = vmul.f32 %v141, %v143
    %v146 = vmul.f32 %v142, %v144
    %v147 = vld [vmem:[#allocation8] sm:$0xff]
    %v148 = vadd.f32 %v145, %v146
    %v149 = vadd.f32 %v147, %v148
    %150 = vst [vmem:[#allocation8] sm:$0xff] %v149
    // Predicated region
    $region30: #{tpu_custom_call.1} parent=1 // pred_check
      _
    $region31: #{tpu_custom_call.1} parent=1 // pred_check_branch
      %152 = sbr.rel (0) target = $region33
    $region32: #{tpu_custom_call.1} parent=1 // pred_region
      %154 = vsyncadd [#allocation4], 0
      %s156 = sshll.u32 [#allocation8], 4
      %s157 = int_to_ptr.vmem [resolvable:$true] %s156
      %s158 = sshll.u32 %s3, 4
      %s159 = int_to_ptr.hbm [resolvable:$true] %s158
      %161 = dma.vmem_to_hbm [thread:$0]  %s157, 128, %s159, [#allocation4]
    $region33: #{tpu_custom_call.1} parent=1 // pred_fallthru
      _
    // Predicated region
    $region34: #{tpu_custom_call.1} parent=1 // pred_check
      _
    $region35: #{tpu_custom_call.1} parent=1 // pred_check_branch
      %163 = sbr.rel (0) target = $region37
    $region36: #{tpu_custom_call.1} parent=1 // pred_region
      %165 = dma.done [#allocation4], 128
    $region37: #{tpu_custom_call.1} parent=1 // pred_fallthru
      _
    %166 = vsyncpa [#allocation3], 1
    %167 = vsyncpa [#allocation6], 1
    %168 = vsyncpa [#allocation4], 1

</llo_original>
